<compile_context>
chip_gen: v5e
topology: v5e:2x2
jax: 0.10.0
libtpu: 0.0.40
codegen_flags: <defaults>
</compile_context>

<pallas_src>
import functools

import jax
import jax.numpy as jnp
from jax import lax
from jax.experimental import pallas as pl
from jax.experimental.pallas import tpu as pltpu


def fused_loss_kernel(*refs, gamma, size_average, reg_weight, bs, n_feat, a_batches):
    if reg_weight > 0.0:
        pred_ref, tgt_ref, alpha_ref, a_ref, out_ref = refs
    else:
        pred_ref, tgt_ref, alpha_ref, out_ref = refs
        a_ref = None

    x = pred_ref[...].astype(jnp.float32)              # (B, K) f32 (in-kernel cast, bf16-friendly)
    B, K = x.shape
    t = tgt_ref[...]                                   # (B, 1) i32

    classes = lax.broadcasted_iota(jnp.int32, (B, K), 1)
    onehot = (classes == t).astype(jnp.float32)        # (B, K)

    # log-softmax along classes (matches F.softmax / nn.CrossEntropyLoss on 2-D input)
    m = jnp.max(x, axis=1, keepdims=True)              # (B, 1)
    z = x - m
    denom = jnp.sum(jnp.exp(z), axis=1, keepdims=True) # (B, 1)
    logp = z - jnp.log(denom)                          # (B, K)

    logp_t = jnp.sum(onehot * logp, axis=1, keepdims=True)        # (B, 1)  log p(target)
    pn = jnp.exp(logp_t)                                          # (B, 1)  p(target)
    w = jnp.sum(onehot * alpha_ref[...], axis=1, keepdims=True)   # (B, 1)  per-sample weight

    # weighted-mean cross entropy (nn.CrossEntropyLoss(weight=alpha, reduction='mean'))
    num = jnp.sum(w * (-logp_t), axis=0, keepdims=True)           # (1, 1)
    den = jnp.sum(w, axis=0, keepdims=True)                       # (1, 1)
    ce = num / jnp.maximum(den, jnp.float32(1e-30))               # (1, 1)

    if gamma == 0.0:                                   # trace-time branch; avoids 0*log(0) NaN
        focal = jnp.ones_like(pn)                      # (B, 1)
    else:
        focal = jnp.maximum(1.0 - pn, 0.0) ** gamma    # (B, 1)

    if size_average:
        red = jnp.mean(focal, axis=0, keepdims=True)   # (1, 1)
    else:
        red = jnp.sum(focal, axis=0, keepdims=True)

    loss = red * ce                                    # (1, 1)

    if reg_weight > 0.0:
        n = n_feat
        # 64x64 identity, hoisted once (JAX does not CSE broadcast_in_dim inside the loop).
        eye = (lax.broadcasted_iota(jnp.int32, (n, n), 0) ==
               lax.broadcasted_iota(jnp.int32, (n, n), 1)).astype(jnp.float32)
        frob_sq = jnp.zeros((1, 1), jnp.float32)
        for b in range(a_batches):                     # small static loop; see TODO for large Bn
            blk = a_ref[b]                             # (n, n), native dtype; MXU consumes directly
            # contract on the shared last dim -> A_b @ A_b^T without an explicit transpose
            g = lax.dot_general(blk, blk, (((1,), (1,)), ((), ())),
                                preferred_element_type=jnp.float32)   # (n, n) f32
            d = eye - g                                # exact per-matrix residual (no cancellation trick)
            frob_sq = frob_sq + jnp.sum(d * d, keepdims=True)
        loss = loss + (reg_weight / float(bs)) * jnp.sqrt(frob_sq)

    out_ref[...] = loss


def pointnet_loss(predictions, targets, A=None, *, alpha=None, gamma=0.0,
                  reg_weight=0.0, size_average=True):
    B, K = predictions.shape

    if alpha is None:
        alpha_arr = jnp.ones((1, K), jnp.float32)
    elif isinstance(alpha, (float, int)):
        assert K == 2, "scalar alpha builds a 2-class weight vector (mirrors the PyTorch module)"
        alpha_arr = jnp.asarray([alpha, 1.0 - alpha], jnp.float32).reshape(1, -1)
    else:
        alpha_arr = jnp.asarray(alpha, jnp.float32).reshape(1, -1)
    tgt2d = targets.reshape(B, 1).astype(jnp.int32)

    use_reg = (reg_weight > 0.0) and (A is not None)
    if use_reg:
        Bn, n, _ = A.shape
    else:
        Bn, n = 0, 64

    kernel = functools.partial(
        fused_loss_kernel,
        gamma=float(gamma), size_average=bool(size_average),
        reg_weight=float(reg_weight) if use_reg else 0.0,
        bs=int(B), n_feat=int(n), a_batches=int(Bn))

    in_specs = [
        pl.BlockSpec((B, K), lambda i: (0, 0)),
        pl.BlockSpec((B, 1), lambda i: (0, 0)),
        pl.BlockSpec(alpha_arr.shape, lambda i: (0, 0)),
    ]
    args = [predictions, tgt2d, alpha_arr]
    a_bytes = 0
    if use_reg:
        in_specs.append(pl.BlockSpec((Bn, n, n), lambda i: (0, 0, 0)))
        args.append(A)                                   # no pad / astype / reshape copies of A
        a_bytes = int(Bn) * int(n) * int(n) * A.dtype.itemsize

    # VMEM guard (mainly for v7x's 64 MiB): size the scoped limit from the operands.
    pred_bytes = int(B) * int(K) * predictions.dtype.itemsize
    needed = 2 * (a_bytes + pred_bytes) + (4 << 20)
    vmem_limit = int(min(max(needed, 32 << 20), 64 << 20))

    out = pl.pallas_call(
        kernel,
        out_shape=jax.ShapeDtypeStruct((1, 1), jnp.float32),
        grid=(1,),
        in_specs=in_specs,
        out_specs=pl.BlockSpec((1, 1), lambda i: (0, 0)),
        compiler_params=pltpu.CompilerParams(
            dimension_semantics=("arbitrary",),
            vmem_limit_bytes=vmem_limit),
    )(*args)
    return out[0, 0]


def pointnet_loss_ref(predictions, targets, A=None, *, alpha=None, gamma=0.0,
                      reg_weight=0.0, size_average=True):
    """Pure-JAX reference mirroring the PyTorch semantics."""
    B, K = predictions.shape
    logp = jax.nn.log_softmax(predictions.astype(jnp.float32), axis=1)
    logp_t = jnp.take_along_axis(logp, targets[:, None], axis=1)[:, 0]
    if alpha is None:
        w = jnp.ones((B,), jnp.float32)
    elif isinstance(alpha, (float, int)):
        w = jnp.asarray([alpha, 1.0 - alpha], jnp.float32)[targets]
    else:
        w = jnp.asarray(alpha, jnp.float32)[targets]
    ce = jnp.sum(w * (-logp_t)) / jnp.sum(w)
    pn = jnp.exp(logp_t)
    loss = (1.0 - pn) ** gamma * ce
    loss = loss.mean() if size_average else loss.sum()
    if reg_weight > 0 and A is not None:
        I = jnp.eye(A.shape[1], dtype=jnp.float32)
        diff = I[None] - jnp.einsum('bij,bkj->bik', A.astype(jnp.float32), A.astype(jnp.float32))
        loss = loss + reg_weight * jnp.sqrt(jnp.sum(diff * diff)) / B
    return loss


if __name__ == "__main__":
    key = jax.random.PRNGKey(0)
    k1, k2, k3, k4, k5, k6 = jax.random.split(key, 6)

    # --- test 1: weighted, focal, with regularizer ---
    B, K = 8, 4
    predictions = jax.random.normal(k1, (B, K), dtype=jnp.float32)
    targets = jax.random.randint(k2, (B,), 0, K, dtype=jnp.int32)
    A = jax.random.normal(k3, (B, 64, 64), dtype=jnp.float32) * 0.1

    alpha = [0.1, 0.2, 0.3, 0.4]
    out = pointnet_loss(predictions, targets, A,
                        alpha=alpha, gamma=2.0, reg_weight=0.001,
                        size_average=True)
    out = jax.block_until_ready(out)
    ref = pointnet_loss_ref(predictions, targets, A,
                            alpha=alpha, gamma=2.0, reg_weight=0.001,
                            size_average=True)
    assert jnp.allclose(out, ref, rtol=1e-4, atol=1e-5), (out, ref)

    # --- test 2: unweighted, gamma=0, sum reduction, batch not a multiple of anything, with reg ---
    B2 = 6
    predictions2 = jax.random.normal(k4, (B2, K), dtype=jnp.float32)
    targets2 = jax.random.randint(k5, (B2,), 0, K, dtype=jnp.int32)
    A2 = jax.random.normal(k6, (B2, 64, 64), dtype=jnp.float32) * 0.1

    out2 = pointnet_loss(predictions2, targets2, A2,
                         alpha=None, gamma=0.0, reg_weight=0.01,
                         size_average=False)
    out2 = jax.block_until_ready(out2)
    ref2 = pointnet_loss_ref(predictions2, targets2, A2,
                             alpha=None, gamma=0.0, reg_weight=0.01,
                             size_average=False)
    assert jnp.allclose(out2, ref2, rtol=1e-4, atol=1e-5), (out2, ref2)

    # --- test 3: no-regularizer path (3-input kernel variant, no dummy A operand) ---
    out3 = pointnet_loss(predictions2, targets2, None,
                         alpha=None, gamma=1.0, reg_weight=0.0,
                         size_average=True)
    out3 = jax.block_until_ready(out3)
    ref3 = pointnet_loss_ref(predictions2, targets2, None,
                             alpha=None, gamma=1.0, reg_weight=0.0,
                             size_average=True)
    assert jnp.allclose(out3, ref3, rtol=1e-4, atol=1e-5), (out3, ref3)

    print("KERNEL_OK")
</pallas_src>

<mosaic_0001>
module attributes {stable_mosaic.version = 11 : i64} {
  func.func @fused_loss_kernel(%arg0: i32, %arg1: memref<8x4xf32, #tpu.memory_space<vmem>>, %arg2: memref<8x1xi32, #tpu.memory_space<vmem>>, %arg3: memref<1x4xf32, #tpu.memory_space<vmem>>, %arg4: memref<8x64x64xf32, #tpu.memory_space<vmem>>, %arg5: memref<1x1xf32, #tpu.memory_space<vmem>>) attributes {dimension_semantics = [#tpu.dimension_semantics<arbitrary>], iteration_bounds = array<i64: 1>, scalar_prefetch = 0 : i64, scratch_operands = 0 : i64, tpu.core_type = #tpu.core_type<tc>, window_params = [{pipeline_mode = #tpu.pipeline_mode<synchronous>, transform_indices = @transform_0, window_bounds = array<i64: 8, 4>}, {pipeline_mode = #tpu.pipeline_mode<synchronous>, transform_indices = @transform_1, window_bounds = array<i64: 8, 1>}, {pipeline_mode = #tpu.pipeline_mode<synchronous>, transform_indices = @transform_2, window_bounds = array<i64: 1, 4>}, {pipeline_mode = #tpu.pipeline_mode<synchronous>, transform_indices = @transform_3, window_bounds = array<i64: 8, 64, 64>}, {pipeline_mode = #tpu.pipeline_mode<synchronous>, transform_indices = @transform_4, window_bounds = array<i64: 1, 1>}]} {
    %c0 = arith.constant 0 : index
    %c0_0 = arith.constant 0 : index
    %0 = vector.load %arg1[%c0, %c0_0] : memref<8x4xf32, #tpu.memory_space<vmem>>, vector<8x4xf32>
    %c0_1 = arith.constant 0 : index
    %c0_2 = arith.constant 0 : index
    %1 = vector.load %arg2[%c0_1, %c0_2] : memref<8x1xi32, #tpu.memory_space<vmem>>, vector<8x1xi32>
    %2 = tpu.iota {dimensions = array<i32: 1>} : vector<8x4xi32>
    %3 = vector.broadcast %1 : vector<8x1xi32> to vector<8x4xi32>
    %4 = arith.cmpi eq, %2, %3 : vector<8x4xi32>
    %5 = arith.extui %4 : vector<8x4xi1> to vector<8x4xi32>
    %6 = arith.sitofp %5 : vector<8x4xi32> to vector<8x4xf32>
    %cst = arith.constant dense<0xFF800000> : vector<8xf32>
    %7 = vector.multi_reduction <maximumf>, %0, %cst [1] : vector<8x4xf32> to vector<8xf32>
    %8 = vector.shape_cast %7 : vector<8xf32> to vector<8x1xf32>
    %9 = vector.broadcast %8 : vector<8x1xf32> to vector<8x4xf32>
    %10 = arith.subf %0, %9 : vector<8x4xf32>
    %11 = math.exp %10 : vector<8x4xf32>
    %cst_3 = arith.constant dense<0.000000e+00> : vector<8xf32>
    %12 = vector.multi_reduction <add>, %11, %cst_3 [1] : vector<8x4xf32> to vector<8xf32>
    %13 = vector.shape_cast %12 : vector<8xf32> to vector<8x1xf32>
    %14 = math.log %13 : vector<8x1xf32>
    %15 = vector.broadcast %14 : vector<8x1xf32> to vector<8x4xf32>
    %16 = arith.subf %10, %15 : vector<8x4xf32>
    %17 = arith.mulf %6, %16 : vector<8x4xf32>
    %cst_4 = arith.constant dense<0.000000e+00> : vector<8xf32>
    %18 = vector.multi_reduction <add>, %17, %cst_4 [1] : vector<8x4xf32> to vector<8xf32>
    %19 = vector.shape_cast %18 : vector<8xf32> to vector<8x1xf32>
    %20 = math.exp %19 : vector<8x1xf32>
    %c0_5 = arith.constant 0 : index
    %c0_6 = arith.constant 0 : index
    %21 = vector.load %arg3[%c0_5, %c0_6] : memref<1x4xf32, #tpu.memory_space<vmem>>, vector<1x4xf32>
    %22 = vector.broadcast %21 : vector<1x4xf32> to vector<8x4xf32>
    %23 = arith.mulf %6, %22 : vector<8x4xf32>
    %cst_7 = arith.constant dense<0.000000e+00> : vector<8xf32>
    %24 = vector.multi_reduction <add>, %23, %cst_7 [1] : vector<8x4xf32> to vector<8xf32>
    %25 = vector.shape_cast %24 : vector<8xf32> to vector<8x1xf32>
    %cst_8 = arith.constant 0.000000e+00 : f32
    %26 = vector.broadcast %cst_8 : f32 to vector<8x1xf32>
    %27 = arith.subf %26, %19 : vector<8x1xf32>
    %28 = arith.mulf %25, %27 : vector<8x1xf32>
    %cst_9 = arith.constant dense<0.000000e+00> : vector<1xf32>
    %29 = vector.multi_reduction <add>, %28, %cst_9 [0] : vector<8x1xf32> to vector<1xf32>
    %30 = vector.shape_cast %29 : vector<1xf32> to vector<1x1xf32>
    %cst_10 = arith.constant dense<0.000000e+00> : vector<1xf32>
    %31 = vector.multi_reduction <add>, %25, %cst_10 [0] : vector<8x1xf32> to vector<1xf32>
    %32 = vector.shape_cast %31 : vector<1xf32> to vector<1x1xf32>
    %cst_11 = arith.constant 1.000000e-30 : f32
    %33 = vector.broadcast %cst_11 : f32 to vector<1x1xf32>
    %34 = arith.maximumf %32, %33 : vector<1x1xf32>
    %35 = arith.divf %30, %34 : vector<1x1xf32>
    %cst_12 = arith.constant 1.000000e+00 : f32
    %36 = vector.broadcast %cst_12 : f32 to vector<8x1xf32>
    %37 = arith.subf %36, %20 : vector<8x1xf32>
    %cst_13 = arith.constant 0.000000e+00 : f32
    %38 = vector.broadcast %cst_13 : f32 to vector<8x1xf32>
    %39 = arith.maximumf %37, %38 : vector<8x1xf32>
    %cst_14 = arith.constant 2.000000e+00 : f32
    %40 = vector.broadcast %cst_14 : f32 to vector<8x1xf32>
    %41 = math.powf %39, %40 : vector<8x1xf32>
    %cst_15 = arith.constant dense<0.000000e+00> : vector<1xf32>
    %42 = vector.multi_reduction <add>, %41, %cst_15 [0] : vector<8x1xf32> to vector<1xf32>
    %43 = vector.shape_cast %42 : vector<1xf32> to vector<1x1xf32>
    %cst_16 = arith.constant 8.000000e+00 : f32
    %44 = vector.broadcast %cst_16 : f32 to vector<1x1xf32>
    %45 = arith.divf %43, %44 : vector<1x1xf32>
    %46 = arith.mulf %45, %35 : vector<1x1xf32>
    %47 = tpu.iota {dimensions = array<i32: 0>} : vector<64x64xi32>
    %48 = tpu.iota {dimensions = array<i32: 1>} : vector<64x64xi32>
    %49 = arith.cmpi eq, %47, %48 : vector<64x64xi32>
    %50 = arith.extui %49 : vector<64x64xi1> to vector<64x64xi32>
    %51 = arith.sitofp %50 : vector<64x64xi32> to vector<64x64xf32>
    %cst_17 = arith.constant 0.000000e+00 : f32
    %52 = vector.broadcast %cst_17 : f32 to vector<1x1xf32>
    %c0_18 = arith.constant 0 : index
    %c0_19 = arith.constant 0 : index
    %c0_20 = arith.constant 0 : index
    %53 = vector.load %arg4[%c0_18, %c0_19, %c0_20] : memref<8x64x64xf32, #tpu.memory_space<vmem>>, vector<1x64x64xf32>
    %54 = vector.shape_cast %53 : vector<1x64x64xf32> to vector<64x64xf32>
    %cst_21 = arith.constant dense<0.000000e+00> : vector<64x64xf32>
    %55 = tpu.matmul %54, %54, %cst_21 {dimension_numbers = #tpu.dot_dimension_numbers<[1], [1], [0], [0], [0, 0, 1, 0], [], []>} : vector<64x64xf32>, vector<64x64xf32>, vector<64x64xf32> -> vector<64x64xf32>
    %56 = arith.subf %51, %55 : vector<64x64xf32>
    %57 = arith.mulf %56, %56 : vector<64x64xf32>
    %58 = vector.shape_cast %57 : vector<64x64xf32> to vector<1x64x64xf32>
    %cst_22 = arith.constant dense<0.000000e+00> : vector<1xf32>
    %59 = vector.multi_reduction <add>, %58, %cst_22 [1, 2] : vector<1x64x64xf32> to vector<1xf32>
    %60 = vector.shape_cast %59 : vector<1xf32> to vector<1x1x1xf32>
    %61 = vector.extract %60[0, 0, 0] : f32 from vector<1x1x1xf32>
    %62 = vector.broadcast %61 : f32 to vector<1x1xf32>
    %63 = arith.addf %52, %62 : vector<1x1xf32>
    %c1 = arith.constant 1 : index
    %c0_23 = arith.constant 0 : index
    %c0_24 = arith.constant 0 : index
    %64 = vector.load %arg4[%c1, %c0_23, %c0_24] : memref<8x64x64xf32, #tpu.memory_space<vmem>>, vector<1x64x64xf32>
    %65 = vector.shape_cast %64 : vector<1x64x64xf32> to vector<64x64xf32>
    %cst_25 = arith.constant dense<0.000000e+00> : vector<64x64xf32>
    %66 = tpu.matmul %65, %65, %cst_25 {dimension_numbers = #tpu.dot_dimension_numbers<[1], [1], [0], [0], [0, 0, 1, 0], [], []>} : vector<64x64xf32>, vector<64x64xf32>, vector<64x64xf32> -> vector<64x64xf32>
    %67 = arith.subf %51, %66 : vector<64x64xf32>
    %68 = arith.mulf %67, %67 : vector<64x64xf32>
    %69 = vector.shape_cast %68 : vector<64x64xf32> to vector<1x64x64xf32>
    %cst_26 = arith.constant dense<0.000000e+00> : vector<1xf32>
    %70 = vector.multi_reduction <add>, %69, %cst_26 [1, 2] : vector<1x64x64xf32> to vector<1xf32>
    %71 = vector.shape_cast %70 : vector<1xf32> to vector<1x1x1xf32>
    %72 = vector.extract %71[0, 0, 0] : f32 from vector<1x1x1xf32>
    %73 = vector.broadcast %72 : f32 to vector<1x1xf32>
    %74 = arith.addf %63, %73 : vector<1x1xf32>
    %c2 = arith.constant 2 : index
    %c0_27 = arith.constant 0 : index
    %c0_28 = arith.constant 0 : index
    %75 = vector.load %arg4[%c2, %c0_27, %c0_28] : memref<8x64x64xf32, #tpu.memory_space<vmem>>, vector<1x64x64xf32>
    %76 = vector.shape_cast %75 : vector<1x64x64xf32> to vector<64x64xf32>
    %cst_29 = arith.constant dense<0.000000e+00> : vector<64x64xf32>
    %77 = tpu.matmul %76, %76, %cst_29 {dimension_numbers = #tpu.dot_dimension_numbers<[1], [1], [0], [0], [0, 0, 1, 0], [], []>} : vector<64x64xf32>, vector<64x64xf32>, vector<64x64xf32> -> vector<64x64xf32>
    %78 = arith.subf %51, %77 : vector<64x64xf32>
    %79 = arith.mulf %78, %78 : vector<64x64xf32>
    %80 = vector.shape_cast %79 : vector<64x64xf32> to vector<1x64x64xf32>
    %cst_30 = arith.constant dense<0.000000e+00> : vector<1xf32>
    %81 = vector.multi_reduction <add>, %80, %cst_30 [1, 2] : vector<1x64x64xf32> to vector<1xf32>
    %82 = vector.shape_cast %81 : vector<1xf32> to vector<1x1x1xf32>
    %83 = vector.extract %82[0, 0, 0] : f32 from vector<1x1x1xf32>
    %84 = vector.broadcast %83 : f32 to vector<1x1xf32>
    %85 = arith.addf %74, %84 : vector<1x1xf32>
    %c3 = arith.constant 3 : index
    %c0_31 = arith.constant 0 : index
    %c0_32 = arith.constant 0 : index
    %86 = vector.load %arg4[%c3, %c0_31, %c0_32] : memref<8x64x64xf32, #tpu.memory_space<vmem>>, vector<1x64x64xf32>
    %87 = vector.shape_cast %86 : vector<1x64x64xf32> to vector<64x64xf32>
    %cst_33 = arith.constant dense<0.000000e+00> : vector<64x64xf32>
    %88 = tpu.matmul %87, %87, %cst_33 {dimension_numbers = #tpu.dot_dimension_numbers<[1], [1], [0], [0], [0, 0, 1, 0], [], []>} : vector<64x64xf32>, vector<64x64xf32>, vector<64x64xf32> -> vector<64x64xf32>
    %89 = arith.subf %51, %88 : vector<64x64xf32>
    %90 = arith.mulf %89, %89 : vector<64x64xf32>
    %91 = vector.shape_cast %90 : vector<64x64xf32> to vector<1x64x64xf32>
    %cst_34 = arith.constant dense<0.000000e+00> : vector<1xf32>
    %92 = vector.multi_reduction <add>, %91, %cst_34 [1, 2] : vector<1x64x64xf32> to vector<1xf32>
    %93 = vector.shape_cast %92 : vector<1xf32> to vector<1x1x1xf32>
    %94 = vector.extract %93[0, 0, 0] : f32 from vector<1x1x1xf32>
    %95 = vector.broadcast %94 : f32 to vector<1x1xf32>
    %96 = arith.addf %85, %95 : vector<1x1xf32>
    %c4 = arith.constant 4 : index
    %c0_35 = arith.constant 0 : index
    %c0_36 = arith.constant 0 : index
    %97 = vector.load %arg4[%c4, %c0_35, %c0_36] : memref<8x64x64xf32, #tpu.memory_space<vmem>>, vector<1x64x64xf32>
    %98 = vector.shape_cast %97 : vector<1x64x64xf32> to vector<64x64xf32>
    %cst_37 = arith.constant dense<0.000000e+00> : vector<64x64xf32>
    %99 = tpu.matmul %98, %98, %cst_37 {dimension_numbers = #tpu.dot_dimension_numbers<[1], [1], [0], [0], [0, 0, 1, 0], [], []>} : vector<64x64xf32>, vector<64x64xf32>, vector<64x64xf32> -> vector<64x64xf32>
    %100 = arith.subf %51, %99 : vector<64x64xf32>
    %101 = arith.mulf %100, %100 : vector<64x64xf32>
    %102 = vector.shape_cast %101 : vector<64x64xf32> to vector<1x64x64xf32>
    %cst_38 = arith.constant dense<0.000000e+00> : vector<1xf32>
    %103 = vector.multi_reduction <add>, %102, %cst_38 [1, 2] : vector<1x64x64xf32> to vector<1xf32>
    %104 = vector.shape_cast %103 : vector<1xf32> to vector<1x1x1xf32>
    %105 = vector.extract %104[0, 0, 0] : f32 from vector<1x1x1xf32>
    %106 = vector.broadcast %105 : f32 to vector<1x1xf32>
    %107 = arith.addf %96, %106 : vector<1x1xf32>
    %c5 = arith.constant 5 : index
    %c0_39 = arith.constant 0 : index
    %c0_40 = arith.constant 0 : index
    %108 = vector.load %arg4[%c5, %c0_39, %c0_40] : memref<8x64x64xf32, #tpu.memory_space<vmem>>, vector<1x64x64xf32>
    %109 = vector.shape_cast %108 : vector<1x64x64xf32> to vector<64x64xf32>
    %cst_41 = arith.constant dense<0.000000e+00> : vector<64x64xf32>
    %110 = tpu.matmul %109, %109, %cst_41 {dimension_numbers = #tpu.dot_dimension_numbers<[1], [1], [0], [0], [0, 0, 1, 0], [], []>} : vector<64x64xf32>, vector<64x64xf32>, vector<64x64xf32> -> vector<64x64xf32>
    %111 = arith.subf %51, %110 : vector<64x64xf32>
    %112 = arith.mulf %111, %111 : vector<64x64xf32>
    %113 = vector.shape_cast %112 : vector<64x64xf32> to vector<1x64x64xf32>
    %cst_42 = arith.constant dense<0.000000e+00> : vector<1xf32>
    %114 = vector.multi_reduction <add>, %113, %cst_42 [1, 2] : vector<1x64x64xf32> to vector<1xf32>
    %115 = vector.shape_cast %114 : vector<1xf32> to vector<1x1x1xf32>
    %116 = vector.extract %115[0, 0, 0] : f32 from vector<1x1x1xf32>
    %117 = vector.broadcast %116 : f32 to vector<1x1xf32>
    %118 = arith.addf %107, %117 : vector<1x1xf32>
    %c6 = arith.constant 6 : index
    %c0_43 = arith.constant 0 : index
    %c0_44 = arith.constant 0 : index
    %119 = vector.load %arg4[%c6, %c0_43, %c0_44] : memref<8x64x64xf32, #tpu.memory_space<vmem>>, vector<1x64x64xf32>
    %120 = vector.shape_cast %119 : vector<1x64x64xf32> to vector<64x64xf32>
    %cst_45 = arith.constant dense<0.000000e+00> : vector<64x64xf32>
    %121 = tpu.matmul %120, %120, %cst_45 {dimension_numbers = #tpu.dot_dimension_numbers<[1], [1], [0], [0], [0, 0, 1, 0], [], []>} : vector<64x64xf32>, vector<64x64xf32>, vector<64x64xf32> -> vector<64x64xf32>
    %122 = arith.subf %51, %121 : vector<64x64xf32>
    %123 = arith.mulf %122, %122 : vector<64x64xf32>
    %124 = vector.shape_cast %123 : vector<64x64xf32> to vector<1x64x64xf32>
    %cst_46 = arith.constant dense<0.000000e+00> : vector<1xf32>
    %125 = vector.multi_reduction <add>, %124, %cst_46 [1, 2] : vector<1x64x64xf32> to vector<1xf32>
    %126 = vector.shape_cast %125 : vector<1xf32> to vector<1x1x1xf32>
    %127 = vector.extract %126[0, 0, 0] : f32 from vector<1x1x1xf32>
    %128 = vector.broadcast %127 : f32 to vector<1x1xf32>
    %129 = arith.addf %118, %128 : vector<1x1xf32>
    %c7 = arith.constant 7 : index
    %c0_47 = arith.constant 0 : index
    %c0_48 = arith.constant 0 : index
    %130 = vector.load %arg4[%c7, %c0_47, %c0_48] : memref<8x64x64xf32, #tpu.memory_space<vmem>>, vector<1x64x64xf32>
    %131 = vector.shape_cast %130 : vector<1x64x64xf32> to vector<64x64xf32>
    %cst_49 = arith.constant dense<0.000000e+00> : vector<64x64xf32>
    %132 = tpu.matmul %131, %131, %cst_49 {dimension_numbers = #tpu.dot_dimension_numbers<[1], [1], [0], [0], [0, 0, 1, 0], [], []>} : vector<64x64xf32>, vector<64x64xf32>, vector<64x64xf32> -> vector<64x64xf32>
    %133 = arith.subf %51, %132 : vector<64x64xf32>
    %134 = arith.mulf %133, %133 : vector<64x64xf32>
    %135 = vector.shape_cast %134 : vector<64x64xf32> to vector<1x64x64xf32>
    %cst_50 = arith.constant dense<0.000000e+00> : vector<1xf32>
    %136 = vector.multi_reduction <add>, %135, %cst_50 [1, 2] : vector<1x64x64xf32> to vector<1xf32>
    %137 = vector.shape_cast %136 : vector<1xf32> to vector<1x1x1xf32>
    %138 = vector.extract %137[0, 0, 0] : f32 from vector<1x1x1xf32>
    %139 = vector.broadcast %138 : f32 to vector<1x1xf32>
    %140 = arith.addf %129, %139 : vector<1x1xf32>
    %141 = math.sqrt %140 : vector<1x1xf32>
    %cst_51 = arith.constant 1.250000e-04 : f32
    %142 = vector.broadcast %cst_51 : f32 to vector<1x1xf32>
    %143 = arith.mulf %142, %141 : vector<1x1xf32>
    %144 = arith.addf %46, %143 : vector<1x1xf32>
    %c0_52 = arith.constant 0 : index
    %c0_53 = arith.constant 0 : index
    %145 = vector.load %arg5[%c0_52, %c0_53] : memref<1x1xf32, #tpu.memory_space<vmem>>, vector<1x1xf32>
    tpu.vector_store %arg5[%c0_52, %c0_53], %144 {strides = array<i32>} : memref<1x1xf32, #tpu.memory_space<vmem>>, vector<1x1xf32>,
    return
  }
  func.func @transform_0(%arg0: i32) -> (i32, i32) {
    %c0_i32 = arith.constant 0 : i32
    %c0_i32_0 = arith.constant 0 : i32
    %c0_i32_1 = arith.constant 0 : i32
    return %c0_i32, %c0_i32_0 : i32, i32
  }
  func.func @transform_1(%arg0: i32) -> (i32, i32) {
    %c0_i32 = arith.constant 0 : i32
    %c0_i32_0 = arith.constant 0 : i32
    %c0_i32_1 = arith.constant 0 : i32
    return %c0_i32, %c0_i32_0 : i32, i32
  }
  func.func @transform_2(%arg0: i32) -> (i32, i32) {
    %c0_i32 = arith.constant 0 : i32
    %c0_i32_0 = arith.constant 0 : i32
    %c0_i32_1 = arith.constant 0 : i32
    return %c0_i32, %c0_i32_0 : i32, i32
  }
  func.func @transform_3(%arg0: i32) -> (i32, i32, i32) {
    %c0_i32 = arith.constant 0 : i32
    %c0_i32_0 = arith.constant 0 : i32
    %c0_i32_1 = arith.constant 0 : i32
    %c0_i32_2 = arith.constant 0 : i32
    return %c0_i32, %c0_i32_0, %c0_i32_1 : i32, i32, i32
  }
  func.func @transform_4(%arg0: i32) -> (i32, i32) {
    %c0_i32 = arith.constant 0 : i32
    %c0_i32_0 = arith.constant 0 : i32
    %c0_i32_1 = arith.constant 0 : i32
    return %c0_i32, %c0_i32_0 : i32, i32
  }
}

</mosaic_0001>

<llo_original>
// kernel: tpu_custom_call.1
$region0: #{tpu_custom_call.1}
  #allocation0 [shape = 'u32[]', space=smem, size = 0x4, offset = 0x4, fixed_abs, tag = 'smem constant byte address 0x4 - core index']
  #allocation1 [shape = 'u32[72,128]{1,0:T(1,128)}', space=vmem, size = 0x9000, scoped, tag = 'internal scratch']
  %s0 = inlined_call_operand.vmem [shape: f32[8,4], index: 0, kind: input, shape index: {}]
  %s1 = inlined_call_operand.vmem [shape: s32[8,1], index: 1, kind: input, shape index: {}]
  %s2 = inlined_call_operand.vmem [shape: f32[1,4], index: 2, kind: input, shape index: {}]
  %s3 = inlined_call_operand.hbm [shape: f32[8,64,64], index: 3, kind: input, shape index: {}]
  %s4 = inlined_call_operand.hbm [shape: f32[1,1], index: 4, kind: output, shape index: {}]
  %s5 = sld [smem:[#allocation0]]
  $region30: #{tpu_custom_call.1} parent=0
    _
  %s7 = ssub.s32 1, %s5
  %s8 = scalar_select 0, %s7, %s5
  $region1: #{tpu_custom_call.1} parent=0
    #allocation2 [shape = 'u8[262144]{0}', space=vmem, size = 0x40000, scoped, tag = 'input window, operand 3, single buffered']
    #allocation3 [shape = 's32[1]{0}', space=sflag, size = 0x4, scoped, tag = 'scoped memory for tpu_custom_call.1']
    #allocation4 [shape = 's32[1]{0}', space=sflag, size = 0x4, scoped, tag = 'scoped memory for tpu_custom_call.1']
    #allocation5 [shape = 'u8[512]{0}', space=vmem, size = 0x400, scoped, tag = 'output window, operand 0, single buffered']
    %9 = vsyncpa [#allocation3], 0
    %10 = vsyncpa [#allocation4], 0
    // Predicated region
    $region2: #{tpu_custom_call.1} parent=1 // pred_check
      _
    $region3: #{tpu_custom_call.1} parent=1 // pred_check_branch
      %12 = sbr.rel (0) target = $region5
    $region4: #{tpu_custom_call.1} parent=1 // pred_region
      _
    $region5: #{tpu_custom_call.1} parent=1 // pred_fallthru
      _
    // Predicated region
    $region6: #{tpu_custom_call.1} parent=1 // pred_check
      _
    $region7: #{tpu_custom_call.1} parent=1 // pred_check_branch
      %14 = sbr.rel (0) target = $region9
    $region8: #{tpu_custom_call.1} parent=1 // pred_region
      _
    $region9: #{tpu_custom_call.1} parent=1 // pred_fallthru
      _
    // Predicated region
    $region10: #{tpu_custom_call.1} parent=1 // pred_check
      _
    $region11: #{tpu_custom_call.1} parent=1 // pred_check_branch
      %16 = sbr.rel (0) target = $region13
    $region12: #{tpu_custom_call.1} parent=1 // pred_region
      _
    $region13: #{tpu_custom_call.1} parent=1 // pred_fallthru
      _
    // Predicated region
    $region14: #{tpu_custom_call.1} parent=1 // pred_check
      _
    $region15: #{tpu_custom_call.1} parent=1 // pred_check_branch
      %18 = sbr.rel (0) target = $region17
    $region16: #{tpu_custom_call.1} parent=1 // pred_region
      %20 = vsyncadd [#allocation3], 0
      %s21 = sshll.u32 %s3, 4
      %s22 = int_to_ptr.hbm [resolvable:$true] %s21
      %s23 = sshll.u32 [#allocation2], 4
      %s24 = int_to_ptr.vmem [resolvable:$true] %s23
      %29 = dma.hbm_to_vmem [thread:$0]  %s22, 8192, %s24, [#allocation3], 128, 128, 8
    $region17: #{tpu_custom_call.1} parent=1 // pred_fallthru
      _
    // Predicated region
    $region18: #{tpu_custom_call.1} parent=1 // pred_check
      _
    $region19: #{tpu_custom_call.1} parent=1 // pred_check_branch
      %31 = sbr.rel (0) target = $region21
    $region20: #{tpu_custom_call.1} parent=1 // pred_region
      %33 = dma.done [#allocation3], 8192
    $region21: #{tpu_custom_call.1} parent=1 // pred_fallthru
      _
    %v34 = vld [vmem:[%s0] sm:$0xff]
    %v35 = vld [vmem:[%s1] sm:$0xff]
    %v36 = vlaneseq
    %v37 = vand.u32 %v36, 127
    %38 = vset.pattern.permute.xlu0 0
    %39 = vperm.xlu0 %38, %v35
    %v40 = vpop.permute.xlu0 %39
    %vm41 = vcmp.eq.s32.totalorder %v37, %v40
    %v42 = vsel %vm41, 1, 0
    %v43 = vcvt.s32.f32 %v42
    %vm44 = vcmask 31744
    %v45 = vsel %vm44, %v34, -inf
    %46 = vmax.xlane.f32.xlu0 %v45
    %v47 = vpop.xlane.xlu0 %46
    %v48 = vsub.f32 %v34, %v47
    %v49 = vmul.f32 %v48, 1.442695
    %v50 = vpow.pop %v49
    %v51 = vsel %vm44, %v50, 0.0
    %52 = vadd.xlane.f32.xlu0 %v51
    %v53 = vpop.xlane.xlu0 %52
    %v54 = vlog2.pop %v53
    %v55 = vmul.f32 %v54, 0.6931472
    %v56 = vsub.f32 %v48, %v55
    %v57 = vmul.f32 %v43, %v56
    %v58 = vsel %vm44, %v57, 0.0
    %59 = vadd.xlane.f32.xlu0 %v58
    %v60 = vpop.xlane.xlu0 %59
    %v61 = vmul.f32 %v60, 1.442695
    %v62 = vpow.pop %v61
    %v63 = vld [vmem:[%s2] sm:$0x1]
    %v65 = vperm.slane %v63, 0
    %v67 = vmul.f32 %v43, %v65
    %v68 = vsel %vm44, %v67, 0.0
    %69 = vadd.xlane.f32.xlu0 %v68
    %v70 = vpop.xlane.xlu0 %69
    %v71 = vsub.f32 0.0, %v60
    %v72 = vmul.f32 %v70, %v71
    %v73 = vrot.slane %v72, 4
    %v74 = vadd.f32 %v72, %v73
    %v75 = vrot.slane %v74, 2
    %v76 = vadd.f32 %v74, %v75
    %v77 = vrot.slane %v76, 1
    %v78 = vadd.f32 %v76, %v77
    %v79 = vrot.slane %v70, 4
    %v80 = vadd.f32 %v70, %v79
    %v81 = vrot.slane %v80, 2
    %v82 = vadd.f32 %v80, %v81
    %v83 = vrot.slane %v82, 1
    %v84 = vadd.f32 %v82, %v83
    %v85 = vmax.f32 %v84, 1e-30
    %v86 = vrcp.pop %v85
    %v87 = vmul.f32 %v85, %v86
    %v88 = vsub.f32 1.0, %v87
    %v89 = vmul.f32 %v86, %v88
    %v90 = vadd.f32 %v86, %v89
    %vm91 = vweird.f32 %v85
    %vm92 = vweird.f32 %v86
    %vm93 = vmor %vm91, %vm92
    %v94 = vsel %vm93, %v86, %v90
    %v95 = vand.u32 2147483647, %v85
    %vm96 = vcmp.eq.f32.partialorder %v95, 8.507059e+37
    %v97 = vand.u32 %v85, 2147483648
    %v98 = vor.u32 1.1754944e-38, %v97
    %v99 = vsel %vm96, %v98, %v94
    %v100 = vmul.f32 %v78, %v99
    %v101 = vsub.f32 1.0, %v62
    %v102 = vmax.f32 %v101, 0.0
    %v103 = vpow.f32 %v102, 2.0
    %v104 = vrot.slane %v103, 4
    %v105 = vadd.f32 %v103, %v104
    %v106 = vrot.slane %v105, 2
    %v107 = vadd.f32 %v105, %v106
    %v108 = vrot.slane %v107, 1
    %v109 = vadd.f32 %v107, %v108
    %v110 = vrcp.pop 8.0
    %v111 = vmul.f32 8.0, %v110
    %v112 = vsub.f32 1.0, %v111
    %v113 = vmul.f32 %v110, %v112
    %v114 = vadd.f32 %v110, %v113
    %vm115 = vweird.f32 %v110
    %v116 = vsel %vm115, %v110, %v114
    %v117 = vmul.f32 %v109, %v116
    %v118 = vmul.f32 %v117, %v100
    %v119 = vlaneseq
    %v120 = vshrl.u32 %v119, 7
    %v121 = vadd.s32 %v120, 8
    %v122 = vadd.s32 %v120, 16
    %v123 = vadd.s32 %v120, 24
    %v124 = vadd.s32 %v120, 32
    %v125 = vadd.s32 %v120, 40
    %v126 = vadd.s32 %v120, 48
    %v127 = vadd.s32 %v120, 56
    %vm128 = vcmp.eq.s32.totalorder %v120, %v37
    %vm129 = vcmp.eq.s32.totalorder %v121, %v37
    %vm130 = vcmp.eq.s32.totalorder %v122, %v37
    %vm131 = vcmp.eq.s32.totalorder %v123, %v37
    %vm132 = vcmp.eq.s32.totalorder %v124, %v37
    %vm133 = vcmp.eq.s32.totalorder %v125, %v37
    %vm134 = vcmp.eq.s32.totalorder %v126, %v37
    %vm135 = vcmp.eq.s32.totalorder %v127, %v37
    %v136 = vsel %vm128, 1, 0
    %v137 = vsel %vm129, 1, 0
    %v138 = vsel %vm130, 1, 0
    %v139 = vsel %vm131, 1, 0
    %v140 = vsel %vm132, 1, 0
    %v141 = vsel %vm133, 1, 0
    %v142 = vsel %vm134, 1, 0
    %v143 = vsel %vm135, 1, 0
    %v144 = vcvt.s32.f32 %v136
    %v145 = vcvt.s32.f32 %v137
    %v146 = vcvt.s32.f32 %v138
    %v147 = vcvt.s32.f32 %v139
    %v148 = vcvt.s32.f32 %v140
    %v149 = vcvt.s32.f32 %v141
    %v150 = vcvt.s32.f32 %v142
    %v151 = vcvt.s32.f32 %v143
    %v152 = vld [vmem:[#allocation2] sm:$0xff]
    %v153 = vld [vmem:[#allocation2 + $0x8] sm:$0xff]
    %v154 = vld [vmem:[#allocation2 + $0x10] sm:$0xff]
    %v155 = vld [vmem:[#allocation2 + $0x18] sm:$0xff]
    %v156 = vld [vmem:[#allocation2 + $0x20] sm:$0xff]
    %v157 = vld [vmem:[#allocation2 + $0x28] sm:$0xff]
    %v158 = vld [vmem:[#allocation2 + $0x30] sm:$0xff]
    %v159 = vld [vmem:[#allocation2 + $0x38] sm:$0xff]
    %vm160 = vcmask 523264
    %v162 = vsel %vm160, %v152, 0
    %v165 = vsel %vm160, %v153, 0
    %v168 = vsel %vm160, %v154, 0
    %v171 = vsel %vm160, %v155, 0
    %v174 = vsel %vm160, %v156, 0
    %v177 = vsel %vm160, %v157, 0
    %v180 = vsel %vm160, %v158, 0
    %v183 = vsel %vm160, %v159, 0
    %185 = vmatpush.xpose.msra.mxu0 0.0
    %186 = vmatpush.xpose.msra.mxu0 0.0
    %187 = vmatpush.xpose.msra.mxu0 0.0
    %188 = vmatpush.xpose.msra.mxu0 0.0
    %189 = vmatpush.xpose.msra.mxu0 0.0
    %190 = vmatpush.xpose.msra.mxu0 0.0
    %191 = vmatpush.xpose.msra.mxu0 0.0
    %192 = vmatpush.xpose.msra.mxu0 0.0
    %193 = vmatpush.xpose.msra.mxu0 %v183
    %194 = vmatpush.xpose.msra.mxu0 %v180
    %195 = vmatpush.xpose.msra.mxu0 %v177
    %196 = vmatpush.xpose.msra.mxu0 %v174
    %197 = vmatpush.xpose.msra.mxu0 %v171
    %198 = vmatpush.xpose.msra.mxu0 %v168
    %199 = vmatpush.xpose.msra.mxu0 %v165
    %200 = vmatpush.xpose.msra.mxu0 %v162
    %201 = vmatmul.f32.gmra.mxu0 %v162
    %v202 = vpop.f32.mrf.mxu0
    %v203 = vadd.f32 0.0, %v202
    %204 = vmatmul.f32.gmra.mxu0 %v165
    %v205 = vpop.f32.mrf.mxu0
    %v206 = vadd.f32 0.0, %v205
    %207 = vmatmul.f32.gmra.mxu0 %v168
    %v208 = vpop.f32.mrf.mxu0
    %v209 = vadd.f32 0.0, %v208
    %210 = vmatmul.f32.gmra.mxu0 %v171
    %v211 = vpop.f32.mrf.mxu0
    %v212 = vadd.f32 0.0, %v211
    %213 = vmatmul.f32.gmra.mxu0 %v174
    %v214 = vpop.f32.mrf.mxu0
    %v215 = vadd.f32 0.0, %v214
    %216 = vmatmul.f32.gmra.mxu0 %v177
    %v217 = vpop.f32.mrf.mxu0
    %v218 = vadd.f32 0.0, %v217
    %219 = vmatmul.f32.gmra.mxu0 %v180
    %v220 = vpop.f32.mrf.mxu0
    %v221 = vadd.f32 0.0, %v220
    %222 = vmatmul.f32.gmra.mxu0 %v183
    %v223 = vpop.f32.mrf.mxu0
    %v224 = vadd.f32 0.0, %v223
    %225 = vdwg.mxu0
    %v226 = vsub.f32 %v144, %v203
    %v227 = vsub.f32 %v145, %v206
    %v228 = vsub.f32 %v146, %v209
    %v229 = vsub.f32 %v147, %v212
    %v230 = vsub.f32 %v148, %v215
    %v231 = vsub.f32 %v149, %v218
    %v232 = vsub.f32 %v150, %v221
    %v233 = vsub.f32 %v151, %v224
    %v234 = vmul.f32 %v226, %v226
    %v235 = vmul.f32 %v227, %v227
    %v236 = vmul.f32 %v228, %v228
    %v237 = vmul.f32 %v229, %v229
    %v238 = vmul.f32 %v230, %v230
    %v239 = vmul.f32 %v231, %v231
    %v240 = vmul.f32 %v232, %v232
    %v241 = vmul.f32 %v233, %v233
    %v242 = vsel %vm160, %v234, 0.0
    %v243 = vsel %vm160, %v235, 0.0
    %v244 = vadd.f32 %v242, %v243
    %v245 = vsel %vm160, %v236, 0.0
    %v246 = vadd.f32 %v244, %v245
    %v247 = vsel %vm160, %v237, 0.0
    %v248 = vadd.f32 %v246, %v247
    %v249 = vsel %vm160, %v238, 0.0
    %v250 = vadd.f32 %v248, %v249
    %v251 = vsel %vm160, %v239, 0.0
    %v252 = vadd.f32 %v250, %v251
    %v253 = vsel %vm160, %v240, 0.0
    %v254 = vadd.f32 %v252, %v253
    %v255 = vsel %vm160, %v241, 0.0
    %v256 = vadd.f32 %v254, %v255
    %257 = vadd.xlane.f32.xlu0 %v256
    %v258 = vpop.xlane.xlu0 %257
    %v259 = vrot.slane %v258, 4
    %v260 = vadd.f32 %v258, %v259
    %v261 = vrot.slane %v260, 2
    %v262 = vadd.f32 %v260, %v261
    %v263 = vrot.slane %v262, 1
    %v264 = vadd.f32 %v262, %v263
    %s265 = vtos %v264
    %v266 = vstv %s265
    %v267 = vadd.f32 %v266, 0.0
    %s268 = scalar_lea.vmem [#allocation2], 64
    %v269 = vld [vmem:[%s268] sm:$0xff]
    %v270 = vld [vmem:[%s268 + $0x8] sm:$0xff]
    %v271 = vld [vmem:[%s268 + $0x10] sm:$0xff]
    %v272 = vld [vmem:[%s268 + $0x18] sm:$0xff]
    %v273 = vld [vmem:[%s268 + $0x20] sm:$0xff]
    %v274 = vld [vmem:[%s268 + $0x28] sm:$0xff]
    %v275 = vld [vmem:[%s268 + $0x30] sm:$0xff]
    %v276 = vld [vmem:[%s268 + $0x38] sm:$0xff]
    %v278 = vsel %vm160, %v269, 0
    %v281 = vsel %vm160, %v270, 0
    %v284 = vsel %vm160, %v271, 0
    %v287 = vsel %vm160, %v272, 0
    %v290 = vsel %vm160, %v273, 0
    %v293 = vsel %vm160, %v274, 0
    %v296 = vsel %vm160, %v275, 0
    %v299 = vsel %vm160, %v276, 0
    %301 = vmatpush.xpose.msra.mxu0 0.0
    %302 = vmatpush.xpose.msra.mxu0 0.0
    %303 = vmatpush.xpose.msra.mxu0 0.0
    %304 = vmatpush.xpose.msra.mxu0 0.0
    %305 = vmatpush.xpose.msra.mxu0 0.0
    %306 = vmatpush.xpose.msra.mxu0 0.0
    %307 = vmatpush.xpose.msra.mxu0 0.0
    %308 = vmatpush.xpose.msra.mxu0 0.0
    %309 = vmatpush.xpose.msra.mxu0 %v299
    %310 = vmatpush.xpose.msra.mxu0 %v296
    %311 = vmatpush.xpose.msra.mxu0 %v293
    %312 = vmatpush.xpose.msra.mxu0 %v290
    %313 = vmatpush.xpose.msra.mxu0 %v287
    %314 = vmatpush.xpose.msra.mxu0 %v284
    %315 = vmatpush.xpose.msra.mxu0 %v281
    %316 = vmatpush.xpose.msra.mxu0 %v278
    %317 = vmatmul.f32.gmra.mxu0 %v278
    %v318 = vpop.f32.mrf.mxu0
    %v319 = vadd.f32 0.0, %v318
    %320 = vmatmul.f32.gmra.mxu0 %v281
    %v321 = vpop.f32.mrf.mxu0
    %v322 = vadd.f32 0.0, %v321
    %323 = vmatmul.f32.gmra.mxu0 %v284
    %v324 = vpop.f32.mrf.mxu0
    %v325 = vadd.f32 0.0, %v324
    %326 = vmatmul.f32.gmra.mxu0 %v287
    %v327 = vpop.f32.mrf.mxu0
    %v328 = vadd.f32 0.0, %v327
    %329 = vmatmul.f32.gmra.mxu0 %v290
    %v330 = vpop.f32.mrf.mxu0
    %v331 = vadd.f32 0.0, %v330
    %332 = vmatmul.f32.gmra.mxu0 %v293
    %v333 = vpop.f32.mrf.mxu0
    %v334 = vadd.f32 0.0, %v333
    %335 = vmatmul.f32.gmra.mxu0 %v296
    %v336 = vpop.f32.mrf.mxu0
    %v337 = vadd.f32 0.0, %v336
    %338 = vmatmul.f32.gmra.mxu0 %v299
    %v339 = vpop.f32.mrf.mxu0
    %v340 = vadd.f32 0.0, %v339
    %341 = vdwg.mxu0
    %v342 = vsub.f32 %v144, %v319
    %v343 = vsub.f32 %v145, %v322
    %v344 = vsub.f32 %v146, %v325
    %v345 = vsub.f32 %v147, %v328
    %v346 = vsub.f32 %v148, %v331
    %v347 = vsub.f32 %v149, %v334
    %v348 = vsub.f32 %v150, %v337
    %v349 = vsub.f32 %v151, %v340
    %v350 = vmul.f32 %v342, %v342
    %v351 = vmul.f32 %v343, %v343
    %v352 = vmul.f32 %v344, %v344
    %v353 = vmul.f32 %v345, %v345
    %v354 = vmul.f32 %v346, %v346
    %v355 = vmul.f32 %v347, %v347
    %v356 = vmul.f32 %v348, %v348
    %v357 = vmul.f32 %v349, %v349
    %v358 = vsel %vm160, %v350, 0.0
    %v359 = vsel %vm160, %v351, 0.0
    %v360 = vadd.f32 %v358, %v359
    %v361 = vsel %vm160, %v352, 0.0
    %v362 = vadd.f32 %v360, %v361
    %v363 = vsel %vm160, %v353, 0.0
    %v364 = vadd.f32 %v362, %v363
    %v365 = vsel %vm160, %v354, 0.0
    %v366 = vadd.f32 %v364, %v365
    %v367 = vsel %vm160, %v355, 0.0
    %v368 = vadd.f32 %v366, %v367
    %v369 = vsel %vm160, %v356, 0.0
    %v370 = vadd.f32 %v368, %v369
    %v371 = vsel %vm160, %v357, 0.0
    %v372 = vadd.f32 %v370, %v371
    %373 = vadd.xlane.f32.xlu0 %v372
    %v374 = vpop.xlane.xlu0 %373
    %v375 = vrot.slane %v374, 4
    %v376 = vadd.f32 %v374, %v375
    %v377 = vrot.slane %v376, 2
    %v378 = vadd.f32 %v376, %v377
    %v379 = vrot.slane %v378, 1
    %v380 = vadd.f32 %v378, %v379
    %s381 = vtos %v380
    %v382 = vstv %s381
    %v383 = vadd.f32 %v267, %v382
    %s384 = scalar_lea.vmem [#allocation2], 128
    %v385 = vld [vmem:[%s384] sm:$0xff]
    %v386 = vld [vmem:[%s384 + $0x8] sm:$0xff]
    %v387 = vld [vmem:[%s384 + $0x10] sm:$0xff]
    %v388 = vld [vmem:[%s384 + $0x18] sm:$0xff]
    %v389 = vld [vmem:[%s384 + $0x20] sm:$0xff]
    %v390 = vld [vmem:[%s384 + $0x28] sm:$0xff]
    %v391 = vld [vmem:[%s384 + $0x30] sm:$0xff]
    %v392 = vld [vmem:[%s384 + $0x38] sm:$0xff]
    %v394 = vsel %vm160, %v385, 0
    %v397 = vsel %vm160, %v386, 0
    %v400 = vsel %vm160, %v387, 0
    %v403 = vsel %vm160, %v388, 0
    %v406 = vsel %vm160, %v389, 0
    %v409 = vsel %vm160, %v390, 0
    %v412 = vsel %vm160, %v391, 0
    %v415 = vsel %vm160, %v392, 0
    %417 = vmatpush.xpose.msra.mxu0 0.0
    %418 = vmatpush.xpose.msra.mxu0 0.0
    %419 = vmatpush.xpose.msra.mxu0 0.0
    %420 = vmatpush.xpose.msra.mxu0 0.0
    %421 = vmatpush.xpose.msra.mxu0 0.0
    %422 = vmatpush.xpose.msra.mxu0 0.0
    %423 = vmatpush.xpose.msra.mxu0 0.0
    %424 = vmatpush.xpose.msra.mxu0 0.0
    %425 = vmatpush.xpose.msra.mxu0 %v415
    %426 = vmatpush.xpose.msra.mxu0 %v412
    %427 = vmatpush.xpose.msra.mxu0 %v409
    %428 = vmatpush.xpose.msra.mxu0 %v406
    %429 = vmatpush.xpose.msra.mxu0 %v403
    %430 = vmatpush.xpose.msra.mxu0 %v400
    %431 = vmatpush.xpose.msra.mxu0 %v397
    %432 = vmatpush.xpose.msra.mxu0 %v394
    %433 = vmatmul.f32.gmra.mxu0 %v394
    %v434 = vpop.f32.mrf.mxu0
    %v435 = vadd.f32 0.0, %v434
    %436 = vmatmul.f32.gmra.mxu0 %v397
    %v437 = vpop.f32.mrf.mxu0
    %v438 = vadd.f32 0.0, %v437
    %439 = vmatmul.f32.gmra.mxu0 %v400
    %v440 = vpop.f32.mrf.mxu0
    %v441 = vadd.f32 0.0, %v440
    %442 = vmatmul.f32.gmra.mxu0 %v403
    %v443 = vpop.f32.mrf.mxu0
    %v444 = vadd.f32 0.0, %v443
    %445 = vmatmul.f32.gmra.mxu0 %v406
    %v446 = vpop.f32.mrf.mxu0
    %v447 = vadd.f32 0.0, %v446
    %448 = vmatmul.f32.gmra.mxu0 %v409
    %v449 = vpop.f32.mrf.mxu0
    %v450 = vadd.f32 0.0, %v449
    %451 = vmatmul.f32.gmra.mxu0 %v412
    %v452 = vpop.f32.mrf.mxu0
    %v453 = vadd.f32 0.0, %v452
    %454 = vmatmul.f32.gmra.mxu0 %v415
    %v455 = vpop.f32.mrf.mxu0
    %v456 = vadd.f32 0.0, %v455
    %457 = vdwg.mxu0
    %v458 = vsub.f32 %v144, %v435
    %v459 = vsub.f32 %v145, %v438
    %v460 = vsub.f32 %v146, %v441
    %v461 = vsub.f32 %v147, %v444
    %v462 = vsub.f32 %v148, %v447
    %v463 = vsub.f32 %v149, %v450
    %v464 = vsub.f32 %v150, %v453
    %v465 = vsub.f32 %v151, %v456
    %v466 = vmul.f32 %v458, %v458
    %v467 = vmul.f32 %v459, %v459
    %v468 = vmul.f32 %v460, %v460
    %v469 = vmul.f32 %v461, %v461
    %v470 = vmul.f32 %v462, %v462
    %v471 = vmul.f32 %v463, %v463
    %v472 = vmul.f32 %v464, %v464
    %v473 = vmul.f32 %v465, %v465
    %v474 = vsel %vm160, %v466, 0.0
    %v475 = vsel %vm160, %v467, 0.0
    %v476 = vadd.f32 %v474, %v475
    %v477 = vsel %vm160, %v468, 0.0
    %v478 = vadd.f32 %v476, %v477
    %v479 = vsel %vm160, %v469, 0.0
    %v480 = vadd.f32 %v478, %v479
    %v481 = vsel %vm160, %v470, 0.0
    %v482 = vadd.f32 %v480, %v481
    %v483 = vsel %vm160, %v471, 0.0
    %v484 = vadd.f32 %v482, %v483
    %v485 = vsel %vm160, %v472, 0.0
    %v486 = vadd.f32 %v484, %v485
    %v487 = vsel %vm160, %v473, 0.0
    %v488 = vadd.f32 %v486, %v487
    %489 = vadd.xlane.f32.xlu0 %v488
    %v490 = vpop.xlane.xlu0 %489
    %v491 = vrot.slane %v490, 4
    %v492 = vadd.f32 %v490, %v491
    %v493 = vrot.slane %v492, 2
    %v494 = vadd.f32 %v492, %v493
    %v495 = vrot.slane %v494, 1
    %v496 = vadd.f32 %v494, %v495
    %s497 = vtos %v496
    %v498 = vstv %s497
    %v499 = vadd.f32 %v383, %v498
    %s500 = scalar_lea.vmem [#allocation2], 192
    %v501 = vld [vmem:[%s500] sm:$0xff]
    %v502 = vld [vmem:[%s500 + $0x8] sm:$0xff]
    %v503 = vld [vmem:[%s500 + $0x10] sm:$0xff]
    %v504 = vld [vmem:[%s500 + $0x18] sm:$0xff]
    %v505 = vld [vmem:[%s500 + $0x20] sm:$0xff]
    %v506 = vld [vmem:[%s500 + $0x28] sm:$0xff]
    %v507 = vld [vmem:[%s500 + $0x30] sm:$0xff]
    %v508 = vld [vmem:[%s500 + $0x38] sm:$0xff]
    %v510 = vsel %vm160, %v501, 0
    %v513 = vsel %vm160, %v502, 0
    %v516 = vsel %vm160, %v503, 0
    %v519 = vsel %vm160, %v504, 0
    %v522 = vsel %vm160, %v505, 0
    %v525 = vsel %vm160, %v506, 0
    %v528 = vsel %vm160, %v507, 0
    %v531 = vsel %vm160, %v508, 0
    %533 = vmatpush.xpose.msra.mxu0 0.0
    %534 = vmatpush.xpose.msra.mxu0 0.0
    %535 = vmatpush.xpose.msra.mxu0 0.0
    %536 = vmatpush.xpose.msra.mxu0 0.0
    %537 = vmatpush.xpose.msra.mxu0 0.0
    %538 = vmatpush.xpose.msra.mxu0 0.0
    %539 = vmatpush.xpose.msra.mxu0 0.0
    %540 = vmatpush.xpose.msra.mxu0 0.0
    %541 = vmatpush.xpose.msra.mxu0 %v531
    %542 = vmatpush.xpose.msra.mxu0 %v528
    %543 = vmatpush.xpose.msra.mxu0 %v525
    %544 = vmatpush.xpose.msra.mxu0 %v522
    %545 = vmatpush.xpose.msra.mxu0 %v519
    %546 = vmatpush.xpose.msra.mxu0 %v516
    %547 = vmatpush.xpose.msra.mxu0 %v513
    %548 = vmatpush.xpose.msra.mxu0 %v510
    %549 = vmatmul.f32.gmra.mxu0 %v510
    %v550 = vpop.f32.mrf.mxu0
    %v551 = vadd.f32 0.0, %v550
    %552 = vmatmul.f32.gmra.mxu0 %v513
    %v553 = vpop.f32.mrf.mxu0
    %v554 = vadd.f32 0.0, %v553
    %555 = vmatmul.f32.gmra.mxu0 %v516
    %v556 = vpop.f32.mrf.mxu0
    %v557 = vadd.f32 0.0, %v556
    %558 = vmatmul.f32.gmra.mxu0 %v519
    %v559 = vpop.f32.mrf.mxu0
    %v560 = vadd.f32 0.0, %v559
    %561 = vmatmul.f32.gmra.mxu0 %v522
    %v562 = vpop.f32.mrf.mxu0
    %v563 = vadd.f32 0.0, %v562
    %564 = vmatmul.f32.gmra.mxu0 %v525
    %v565 = vpop.f32.mrf.mxu0
    %v566 = vadd.f32 0.0, %v565
    %567 = vmatmul.f32.gmra.mxu0 %v528
    %v568 = vpop.f32.mrf.mxu0
    %v569 = vadd.f32 0.0, %v568
    %570 = vmatmul.f32.gmra.mxu0 %v531
    %v571 = vpop.f32.mrf.mxu0
    %v572 = vadd.f32 0.0, %v571
    %573 = vdwg.mxu0
    %v574 = vsub.f32 %v144, %v551
    %v575 = vsub.f32 %v145, %v554
    %v576 = vsub.f32 %v146, %v557
    %v577 = vsub.f32 %v147, %v560
    %v578 = vsub.f32 %v148, %v563
    %v579 = vsub.f32 %v149, %v566
    %v580 = vsub.f32 %v150, %v569
    %v581 = vsub.f32 %v151, %v572
    %v582 = vmul.f32 %v574, %v574
    %v583 = vmul.f32 %v575, %v575
    %v584 = vmul.f32 %v576, %v576
    %v585 = vmul.f32 %v577, %v577
    %v586 = vmul.f32 %v578, %v578
    %v587 = vmul.f32 %v579, %v579
    %v588 = vmul.f32 %v580, %v580
    %v589 = vmul.f32 %v581, %v581
    %v590 = vsel %vm160, %v582, 0.0
    %v591 = vsel %vm160, %v583, 0.0
    %v592 = vadd.f32 %v590, %v591
    %v593 = vsel %vm160, %v584, 0.0
    %v594 = vadd.f32 %v592, %v593
    %v595 = vsel %vm160, %v585, 0.0
    %v596 = vadd.f32 %v594, %v595
    %v597 = vsel %vm160, %v586, 0.0
    %v598 = vadd.f32 %v596, %v597
    %v599 = vsel %vm160, %v587, 0.0
    %v600 = vadd.f32 %v598, %v599
    %v601 = vsel %vm160, %v588, 0.0
    %v602 = vadd.f32 %v600, %v601
    %v603 = vsel %vm160, %v589, 0.0
    %v604 = vadd.f32 %v602, %v603
    %605 = vadd.xlane.f32.xlu0 %v604
    %v606 = vpop.xlane.xlu0 %605
    %v607 = vrot.slane %v606, 4
    %v608 = vadd.f32 %v606, %v607
    %v609 = vrot.slane %v608, 2
    %v610 = vadd.f32 %v608, %v609
    %v611 = vrot.slane %v610, 1
    %v612 = vadd.f32 %v610, %v611
    %s613 = vtos %v612
    %v614 = vstv %s613
    %v615 = vadd.f32 %v499, %v614
    %s616 = scalar_lea.vmem [#allocation2], 256
    %v617 = vld [vmem:[%s616] sm:$0xff]
    %v618 = vld [vmem:[%s616 + $0x8] sm:$0xff]
    %v619 = vld [vmem:[%s616 + $0x10] sm:$0xff]
    %v620 = vld [vmem:[%s616 + $0x18] sm:$0xff]
    %v621 = vld [vmem:[%s616 + $0x20] sm:$0xff]
    %v622 = vld [vmem:[%s616 + $0x28] sm:$0xff]
    %v623 = vld [vmem:[%s616 + $0x30] sm:$0xff]
    %v624 = vld [vmem:[%s616 + $0x38] sm:$0xff]
    %v626 = vsel %vm160, %v617, 0
    %v629 = vsel %vm160, %v618, 0
    %v632 = vsel %vm160, %v619, 0
    %v635 = vsel %vm160, %v620, 0
    %v638 = vsel %vm160, %v621, 0
    %v641 = vsel %vm160, %v622, 0
    %v644 = vsel %vm160, %v623, 0
    %v647 = vsel %vm160, %v624, 0
    %649 = vmatpush.xpose.msra.mxu0 0.0
    %650 = vmatpush.xpose.msra.mxu0 0.0
    %651 = vmatpush.xpose.msra.mxu0 0.0
    %652 = vmatpush.xpose.msra.mxu0 0.0
    %653 = vmatpush.xpose.msra.mxu0 0.0
    %654 = vmatpush.xpose.msra.mxu0 0.0
    %655 = vmatpush.xpose.msra.mxu0 0.0
    %656 = vmatpush.xpose.msra.mxu0 0.0
    %657 = vmatpush.xpose.msra.mxu0 %v647
    %658 = vmatpush.xpose.msra.mxu0 %v644
    %659 = vmatpush.xpose.msra.mxu0 %v641
    %660 = vmatpush.xpose.msra.mxu0 %v638
    %661 = vmatpush.xpose.msra.mxu0 %v635
    %662 = vmatpush.xpose.msra.mxu0 %v632
    %663 = vmatpush.xpose.msra.mxu0 %v629
    %664 = vmatpush.xpose.msra.mxu0 %v626
    %665 = vmatmul.f32.gmra.mxu0 %v626
    %v666 = vpop.f32.mrf.mxu0
    %v667 = vadd.f32 0.0, %v666
    %668 = vmatmul.f32.gmra.mxu0 %v629
    %v669 = vpop.f32.mrf.mxu0
    %v670 = vadd.f32 0.0, %v669
    %671 = vmatmul.f32.gmra.mxu0 %v632
    %v672 = vpop.f32.mrf.mxu0
    %v673 = vadd.f32 0.0, %v672
    %674 = vmatmul.f32.gmra.mxu0 %v635
    %v675 = vpop.f32.mrf.mxu0
    %v676 = vadd.f32 0.0, %v675
    %677 = vmatmul.f32.gmra.mxu0 %v638
    %v678 = vpop.f32.mrf.mxu0
    %v679 = vadd.f32 0.0, %v678
    %680 = vmatmul.f32.gmra.mxu0 %v641
    %v681 = vpop.f32.mrf.mxu0
    %v682 = vadd.f32 0.0, %v681
    %683 = vmatmul.f32.gmra.mxu0 %v644
    %v684 = vpop.f32.mrf.mxu0
    %v685 = vadd.f32 0.0, %v684
    %686 = vmatmul.f32.gmra.mxu0 %v647
    %v687 = vpop.f32.mrf.mxu0
    %v688 = vadd.f32 0.0, %v687
    %689 = vdwg.mxu0
    %v690 = vsub.f32 %v144, %v667
    %v691 = vsub.f32 %v145, %v670
    %v692 = vsub.f32 %v146, %v673
    %v693 = vsub.f32 %v147, %v676
    %v694 = vsub.f32 %v148, %v679
    %v695 = vsub.f32 %v149, %v682
    %v696 = vsub.f32 %v150, %v685
    %v697 = vsub.f32 %v151, %v688
    %v698 = vmul.f32 %v690, %v690
    %v699 = vmul.f32 %v691, %v691
    %v700 = vmul.f32 %v692, %v692
    %v701 = vmul.f32 %v693, %v693
    %v702 = vmul.f32 %v694, %v694
    %v703 = vmul.f32 %v695, %v695
    %v704 = vmul.f32 %v696, %v696
    %v705 = vmul.f32 %v697, %v697
    %v706 = vsel %vm160, %v698, 0.0
    %v707 = vsel %vm160, %v699, 0.0
    %v708 = vadd.f32 %v706, %v707
    %v709 = vsel %vm160, %v700, 0.0
    %v710 = vadd.f32 %v708, %v709
    %v711 = vsel %vm160, %v701, 0.0
    %v712 = vadd.f32 %v710, %v711
    %v713 = vsel %vm160, %v702, 0.0
    %v714 = vadd.f32 %v712, %v713
    %v715 = vsel %vm160, %v703, 0.0
    %v716 = vadd.f32 %v714, %v715
    %v717 = vsel %vm160, %v704, 0.0
    %v718 = vadd.f32 %v716, %v717
    %v719 = vsel %vm160, %v705, 0.0
    %v720 = vadd.f32 %v718, %v719
    %721 = vadd.xlane.f32.xlu0 %v720
    %v722 = vpop.xlane.xlu0 %721
    %v723 = vrot.slane %v722, 4
    %v724 = vadd.f32 %v722, %v723
    %v725 = vrot.slane %v724, 2
    %v726 = vadd.f32 %v724, %v725
    %v727 = vrot.slane %v726, 1
    %v728 = vadd.f32 %v726, %v727
    %s729 = vtos %v728
    %v730 = vstv %s729
    %v731 = vadd.f32 %v615, %v730
    %s732 = scalar_lea.vmem [#allocation2], 320
    %v733 = vld [vmem:[%s732] sm:$0xff]
    %v734 = vld [vmem:[%s732 + $0x8] sm:$0xff]
    %v735 = vld [vmem:[%s732 + $0x10] sm:$0xff]
    %v736 = vld [vmem:[%s732 + $0x18] sm:$0xff]
    %v737 = vld [vmem:[%s732 + $0x20] sm:$0xff]
    %v738 = vld [vmem:[%s732 + $0x28] sm:$0xff]
    %v739 = vld [vmem:[%s732 + $0x30] sm:$0xff]
    %v740 = vld [vmem:[%s732 + $0x38] sm:$0xff]
    %v742 = vsel %vm160, %v733, 0
    %v745 = vsel %vm160, %v734, 0
    %v748 = vsel %vm160, %v735, 0
    %v751 = vsel %vm160, %v736, 0
    %v754 = vsel %vm160, %v737, 0
    %v757 = vsel %vm160, %v738, 0
    %v760 = vsel %vm160, %v739, 0
    %v763 = vsel %vm160, %v740, 0
    %765 = vmatpush.xpose.msra.mxu0 0.0
    %766 = vmatpush.xpose.msra.mxu0 0.0
    %767 = vmatpush.xpose.msra.mxu0 0.0
    %768 = vmatpush.xpose.msra.mxu0 0.0
    %769 = vmatpush.xpose.msra.mxu0 0.0
    %770 = vmatpush.xpose.msra.mxu0 0.0
    %771 = vmatpush.xpose.msra.mxu0 0.0
    %772 = vmatpush.xpose.msra.mxu0 0.0
    %773 = vmatpush.xpose.msra.mxu0 %v763
    %774 = vmatpush.xpose.msra.mxu0 %v760
    %775 = vmatpush.xpose.msra.mxu0 %v757
    %776 = vmatpush.xpose.msra.mxu0 %v754
    %777 = vmatpush.xpose.msra.mxu0 %v751
    %778 = vmatpush.xpose.msra.mxu0 %v748
    %779 = vmatpush.xpose.msra.mxu0 %v745
    %780 = vmatpush.xpose.msra.mxu0 %v742
    %781 = vmatmul.f32.gmra.mxu0 %v742
    %v782 = vpop.f32.mrf.mxu0
    %v783 = vadd.f32 0.0, %v782
    %784 = vmatmul.f32.gmra.mxu0 %v745
    %v785 = vpop.f32.mrf.mxu0
    %v786 = vadd.f32 0.0, %v785
    %787 = vmatmul.f32.gmra.mxu0 %v748
    %v788 = vpop.f32.mrf.mxu0
    %v789 = vadd.f32 0.0, %v788
    %790 = vmatmul.f32.gmra.mxu0 %v751
    %v791 = vpop.f32.mrf.mxu0
    %v792 = vadd.f32 0.0, %v791
    %793 = vmatmul.f32.gmra.mxu0 %v754
    %v794 = vpop.f32.mrf.mxu0
    %v795 = vadd.f32 0.0, %v794
    %796 = vmatmul.f32.gmra.mxu0 %v757
    %v797 = vpop.f32.mrf.mxu0
    %v798 = vadd.f32 0.0, %v797
    %799 = vmatmul.f32.gmra.mxu0 %v760
    %v800 = vpop.f32.mrf.mxu0
    %v801 = vadd.f32 0.0, %v800
    %802 = vmatmul.f32.gmra.mxu0 %v763
    %v803 = vpop.f32.mrf.mxu0
    %v804 = vadd.f32 0.0, %v803
    %805 = vdwg.mxu0
    %v806 = vsub.f32 %v144, %v783
    %v807 = vsub.f32 %v145, %v786
    %v808 = vsub.f32 %v146, %v789
    %v809 = vsub.f32 %v147, %v792
    %v810 = vsub.f32 %v148, %v795
    %v811 = vsub.f32 %v149, %v798
    %v812 = vsub.f32 %v150, %v801
    %v813 = vsub.f32 %v151, %v804
    %v814 = vmul.f32 %v806, %v806
    %v815 = vmul.f32 %v807, %v807
    %v816 = vmul.f32 %v808, %v808
    %v817 = vmul.f32 %v809, %v809
    %v818 = vmul.f32 %v810, %v810
    %v819 = vmul.f32 %v811, %v811
    %v820 = vmul.f32 %v812, %v812
    %v821 = vmul.f32 %v813, %v813
    %v822 = vsel %vm160, %v814, 0.0
    %v823 = vsel %vm160, %v815, 0.0
    %v824 = vadd.f32 %v822, %v823
    %v825 = vsel %vm160, %v816, 0.0
    %v826 = vadd.f32 %v824, %v825
    %v827 = vsel %vm160, %v817, 0.0
    %v828 = vadd.f32 %v826, %v827
    %v829 = vsel %vm160, %v818, 0.0
    %v830 = vadd.f32 %v828, %v829
    %v831 = vsel %vm160, %v819, 0.0
    %v832 = vadd.f32 %v830, %v831
    %v833 = vsel %vm160, %v820, 0.0
    %v834 = vadd.f32 %v832, %v833
    %v835 = vsel %vm160, %v821, 0.0
    %v836 = vadd.f32 %v834, %v835
    %837 = vadd.xlane.f32.xlu0 %v836
    %v838 = vpop.xlane.xlu0 %837
    %v839 = vrot.slane %v838, 4
    %v840 = vadd.f32 %v838, %v839
    %v841 = vrot.slane %v840, 2
    %v842 = vadd.f32 %v840, %v841
    %v843 = vrot.slane %v842, 1
    %v844 = vadd.f32 %v842, %v843
    %s845 = vtos %v844
    %v846 = vstv %s845
    %v847 = vadd.f32 %v731, %v846
    %s848 = scalar_lea.vmem [#allocation2], 384
    %v849 = vld [vmem:[%s848] sm:$0xff]
    %v850 = vld [vmem:[%s848 + $0x8] sm:$0xff]
    %v851 = vld [vmem:[%s848 + $0x10] sm:$0xff]
    %v852 = vld [vmem:[%s848 + $0x18] sm:$0xff]
    %v853 = vld [vmem:[%s848 + $0x20] sm:$0xff]
    %v854 = vld [vmem:[%s848 + $0x28] sm:$0xff]
    %v855 = vld [vmem:[%s848 + $0x30] sm:$0xff]
    %v856 = vld [vmem:[%s848 + $0x38] sm:$0xff]
    %v858 = vsel %vm160, %v849, 0
    %v861 = vsel %vm160, %v850, 0
    %v864 = vsel %vm160, %v851, 0
    %v867 = vsel %vm160, %v852, 0
    %v870 = vsel %vm160, %v853, 0
    %v873 = vsel %vm160, %v854, 0
    %v876 = vsel %vm160, %v855, 0
    %v879 = vsel %vm160, %v856, 0
    %881 = vmatpush.xpose.msra.mxu0 0.0
    %882 = vmatpush.xpose.msra.mxu0 0.0
    %883 = vmatpush.xpose.msra.mxu0 0.0
    %884 = vmatpush.xpose.msra.mxu0 0.0
    %885 = vmatpush.xpose.msra.mxu0 0.0
    %886 = vmatpush.xpose.msra.mxu0 0.0
    %887 = vmatpush.xpose.msra.mxu0 0.0
    %888 = vmatpush.xpose.msra.mxu0 0.0
    %889 = vmatpush.xpose.msra.mxu0 %v879
    %890 = vmatpush.xpose.msra.mxu0 %v876
    %891 = vmatpush.xpose.msra.mxu0 %v873
    %892 = vmatpush.xpose.msra.mxu0 %v870
    %893 = vmatpush.xpose.msra.mxu0 %v867
    %894 = vmatpush.xpose.msra.mxu0 %v864
    %895 = vmatpush.xpose.msra.mxu0 %v861
    %896 = vmatpush.xpose.msra.mxu0 %v858
    %897 = vmatmul.f32.gmra.mxu0 %v858
    %v898 = vpop.f32.mrf.mxu0
    %v899 = vadd.f32 0.0, %v898
    %900 = vmatmul.f32.gmra.mxu0 %v861
    %v901 = vpop.f32.mrf.mxu0
    %v902 = vadd.f32 0.0, %v901
    %903 = vmatmul.f32.gmra.mxu0 %v864
    %v904 = vpop.f32.mrf.mxu0
    %v905 = vadd.f32 0.0, %v904
    %906 = vmatmul.f32.gmra.mxu0 %v867
    %v907 = vpop.f32.mrf.mxu0
    %v908 = vadd.f32 0.0, %v907
    %909 = vmatmul.f32.gmra.mxu0 %v870
    %v910 = vpop.f32.mrf.mxu0
    %v911 = vadd.f32 0.0, %v910
    %912 = vmatmul.f32.gmra.mxu0 %v873
    %v913 = vpop.f32.mrf.mxu0
    %v914 = vadd.f32 0.0, %v913
    %915 = vmatmul.f32.gmra.mxu0 %v876
    %v916 = vpop.f32.mrf.mxu0
    %v917 = vadd.f32 0.0, %v916
    %918 = vmatmul.f32.gmra.mxu0 %v879
    %v919 = vpop.f32.mrf.mxu0
    %v920 = vadd.f32 0.0, %v919
    %921 = vdwg.mxu0
    %v922 = vsub.f32 %v144, %v899
    %v923 = vsub.f32 %v145, %v902
    %v924 = vsub.f32 %v146, %v905
    %v925 = vsub.f32 %v147, %v908
    %v926 = vsub.f32 %v148, %v911
    %v927 = vsub.f32 %v149, %v914
    %v928 = vsub.f32 %v150, %v917
    %v929 = vsub.f32 %v151, %v920
    %v930 = vmul.f32 %v922, %v922
    %v931 = vmul.f32 %v923, %v923
    %v932 = vmul.f32 %v924, %v924
    %v933 = vmul.f32 %v925, %v925
    %v934 = vmul.f32 %v926, %v926
    %v935 = vmul.f32 %v927, %v927
    %v936 = vmul.f32 %v928, %v928
    %v937 = vmul.f32 %v929, %v929
    %v938 = vsel %vm160, %v930, 0.0
    %v939 = vsel %vm160, %v931, 0.0
    %v940 = vadd.f32 %v938, %v939
    %v941 = vsel %vm160, %v932, 0.0
    %v942 = vadd.f32 %v940, %v941
    %v943 = vsel %vm160, %v933, 0.0
    %v944 = vadd.f32 %v942, %v943
    %v945 = vsel %vm160, %v934, 0.0
    %v946 = vadd.f32 %v944, %v945
    %v947 = vsel %vm160, %v935, 0.0
    %v948 = vadd.f32 %v946, %v947
    %v949 = vsel %vm160, %v936, 0.0
    %v950 = vadd.f32 %v948, %v949
    %v951 = vsel %vm160, %v937, 0.0
    %v952 = vadd.f32 %v950, %v951
    %953 = vadd.xlane.f32.xlu0 %v952
    %v954 = vpop.xlane.xlu0 %953
    %v955 = vrot.slane %v954, 4
    %v956 = vadd.f32 %v954, %v955
    %v957 = vrot.slane %v956, 2
    %v958 = vadd.f32 %v956, %v957
    %v959 = vrot.slane %v958, 1
    %v960 = vadd.f32 %v958, %v959
    %s961 = vtos %v960
    %v962 = vstv %s961
    %v963 = vadd.f32 %v847, %v962
    %s964 = scalar_lea.vmem [#allocation2], 448
    %v965 = vld [vmem:[%s964] sm:$0xff]
    %v966 = vld [vmem:[%s964 + $0x8] sm:$0xff]
    %v967 = vld [vmem:[%s964 + $0x10] sm:$0xff]
    %v968 = vld [vmem:[%s964 + $0x18] sm:$0xff]
    %v969 = vld [vmem:[%s964 + $0x20] sm:$0xff]
    %v970 = vld [vmem:[%s964 + $0x28] sm:$0xff]
    %v971 = vld [vmem:[%s964 + $0x30] sm:$0xff]
    %v972 = vld [vmem:[%s964 + $0x38] sm:$0xff]
    %v974 = vsel %vm160, %v965, 0
    %v977 = vsel %vm160, %v966, 0
    %v980 = vsel %vm160, %v967, 0
    %v983 = vsel %vm160, %v968, 0
    %v986 = vsel %vm160, %v969, 0
    %v989 = vsel %vm160, %v970, 0
    %v992 = vsel %vm160, %v971, 0
    %v995 = vsel %vm160, %v972, 0
    %997 = vmatpush.xpose.msra.mxu0 0.0
    %998 = vmatpush.xpose.msra.mxu0 0.0
    %999 = vmatpush.xpose.msra.mxu0 0.0
    %1000 = vmatpush.xpose.msra.mxu0 0.0
    %1001 = vmatpush.xpose.msra.mxu0 0.0
    %1002 = vmatpush.xpose.msra.mxu0 0.0
    %1003 = vmatpush.xpose.msra.mxu0 0.0
    %1004 = vmatpush.xpose.msra.mxu0 0.0
    %1005 = vmatpush.xpose.msra.mxu0 %v995
    %1006 = vmatpush.xpose.msra.mxu0 %v992
    %1007 = vmatpush.xpose.msra.mxu0 %v989
    %1008 = vmatpush.xpose.msra.mxu0 %v986
    %1009 = vmatpush.xpose.msra.mxu0 %v983
    %1010 = vmatpush.xpose.msra.mxu0 %v980
    %1011 = vmatpush.xpose.msra.mxu0 %v977
    %1012 = vmatpush.xpose.msra.mxu0 %v974
    %1013 = vmatmul.f32.gmra.mxu0 %v974
    %v1014 = vpop.f32.mrf.mxu0
    %v1015 = vadd.f32 0.0, %v1014
    %1016 = vmatmul.f32.gmra.mxu0 %v977
    %v1017 = vpop.f32.mrf.mxu0
    %v1018 = vadd.f32 0.0, %v1017
    %1019 = vmatmul.f32.gmra.mxu0 %v980
    %v1020 = vpop.f32.mrf.mxu0
    %v1021 = vadd.f32 0.0, %v1020
    %1022 = vmatmul.f32.gmra.mxu0 %v983
    %v1023 = vpop.f32.mrf.mxu0
    %v1024 = vadd.f32 0.0, %v1023
    %1025 = vmatmul.f32.gmra.mxu0 %v986
    %v1026 = vpop.f32.mrf.mxu0
    %v1027 = vadd.f32 0.0, %v1026
    %1028 = vmatmul.f32.gmra.mxu0 %v989
    %v1029 = vpop.f32.mrf.mxu0
    %v1030 = vadd.f32 0.0, %v1029
    %1031 = vmatmul.f32.gmra.mxu0 %v992
    %v1032 = vpop.f32.mrf.mxu0
    %v1033 = vadd.f32 0.0, %v1032
    %1034 = vmatmul.f32.gmra.mxu0 %v995
    %v1035 = vpop.f32.mrf.mxu0
    %v1036 = vadd.f32 0.0, %v1035
    %1037 = vdwg.mxu0
    %v1038 = vsub.f32 %v144, %v1015
    %v1039 = vsub.f32 %v145, %v1018
    %v1040 = vsub.f32 %v146, %v1021
    %v1041 = vsub.f32 %v147, %v1024
    %v1042 = vsub.f32 %v148, %v1027
    %v1043 = vsub.f32 %v149, %v1030
    %v1044 = vsub.f32 %v150, %v1033
    %v1045 = vsub.f32 %v151, %v1036
    %v1046 = vmul.f32 %v1038, %v1038
    %v1047 = vmul.f32 %v1039, %v1039
    %v1048 = vmul.f32 %v1040, %v1040
    %v1049 = vmul.f32 %v1041, %v1041
    %v1050 = vmul.f32 %v1042, %v1042
    %v1051 = vmul.f32 %v1043, %v1043
    %v1052 = vmul.f32 %v1044, %v1044
    %v1053 = vmul.f32 %v1045, %v1045
    %v1054 = vsel %vm160, %v1046, 0.0
    %v1055 = vsel %vm160, %v1047, 0.0
    %v1056 = vadd.f32 %v1054, %v1055
    %v1057 = vsel %vm160, %v1048, 0.0
    %v1058 = vadd.f32 %v1056, %v1057
    %v1059 = vsel %vm160, %v1049, 0.0
    %v1060 = vadd.f32 %v1058, %v1059
    %v1061 = vsel %vm160, %v1050, 0.0
    %v1062 = vadd.f32 %v1060, %v1061
    %v1063 = vsel %vm160, %v1051, 0.0
    %v1064 = vadd.f32 %v1062, %v1063
    %v1065 = vsel %vm160, %v1052, 0.0
    %v1066 = vadd.f32 %v1064, %v1065
    %v1067 = vsel %vm160, %v1053, 0.0
    %v1068 = vadd.f32 %v1066, %v1067
    %1069 = vadd.xlane.f32.xlu0 %v1068
    %v1070 = vpop.xlane.xlu0 %1069
    %v1071 = vrot.slane %v1070, 4
    %v1072 = vadd.f32 %v1070, %v1071
    %v1073 = vrot.slane %v1072, 2
    %v1074 = vadd.f32 %v1072, %v1073
    %v1075 = vrot.slane %v1074, 1
    %v1076 = vadd.f32 %v1074, %v1075
    %s1077 = vtos %v1076
    %v1078 = vstv %s1077
    %v1079 = vadd.f32 %v963, %v1078
    %v1080 = vrsqrt.pop %v1079
    %v1081 = vmul.f32 %v1080, %v1079
    %v1082 = vmul.f32 %v1081, %v1080
    %v1083 = vmul.f32 0.5, %v1082
    %v1084 = vsub.f32 1.5, %v1083
    %v1085 = vmul.f32 %v1080, %v1084
    %v1086 = vmul.f32 %v1079, %v1085
    %vm1087 = vcmp.eq.f32.partialorder %v1079, inf
    %v1088 = vsel %vm1087, %v1079, %v1086
    %vm1089 = vcmp.eq.f32.partialorder %v1079, 0.0
    %v1090 = vand.u32 %v1079, 2147483648
    %v1091 = vsel %vm1089, %v1090, %v1088
    %v1092 = vmul.f32 %v1091, 0.000125
    %v1093 = vadd.f32 %v118, %v1092
    %vm1094 = vcmask 0
    %1095 = vst.msk [vmem:[#allocation5] sm:$0x1] %vm1094, %v1093
    // Predicated region
    $region22: #{tpu_custom_call.1} parent=1 // pred_check
      _
    $region23: #{tpu_custom_call.1} parent=1 // pred_check_branch
      %1097 = sbr.rel (0) target = $region25
    $region24: #{tpu_custom_call.1} parent=1 // pred_region
      %1099 = vsyncadd [#allocation4], 0
      %s1101 = sshll.u32 [#allocation5], 4
      %s1102 = int_to_ptr.vmem [resolvable:$true] %s1101
      %s1103 = sshll.u32 %s4, 4
      %s1104 = int_to_ptr.hbm [resolvable:$true] %s1103
      %1106 = dma.vmem_to_hbm [thread:$0]  %s1102, 16, %s1104, [#allocation4]
    $region25: #{tpu_custom_call.1} parent=1 // pred_fallthru
      _
    // Predicated region
    $region26: #{tpu_custom_call.1} parent=1 // pred_check
      _
    $region27: #{tpu_custom_call.1} parent=1 // pred_check_branch
      %1108 = sbr.rel (0) target = $region29
    $region28: #{tpu_custom_call.1} parent=1 // pred_region
      %1110 = dma.done [#allocation4], 16
    $region29: #{tpu_custom_call.1} parent=1 // pred_fallthru
      _
    %1111 = vsyncpa [#allocation3], 1
    %1112 = vsyncpa [#allocation4], 1

</llo_original>
